<compile_context>
chip_gen: v5e
topology: v5e:2x2
jax: 0.10.0
libtpu: 0.0.40
codegen_flags: <defaults>
</compile_context>

<pallas_src>
import numpy as np
import jax
import jax.numpy as jnp
from jax.experimental import pallas as pl
from jax.experimental.pallas import tpu as pltpu

F_PAD = 128  # lane-dense padded feature width


def _round_up(x, m):
    return (x + m - 1) // m * m


def _pad2d(x, rows, cols):
    return jnp.pad(x, ((0, rows - x.shape[0]), (0, cols - x.shape[1])))


# ---------------------------------------------------------------------------
# Kernel 1: tiny feature transform  XW = X @ W   (bf16 MXU inputs, bf16 out)
# ---------------------------------------------------------------------------
def _xw_kernel(x_ref, w_ref, o_ref):
    o_ref[...] = jnp.dot(
        x_ref[...].astype(jnp.bfloat16),
        w_ref[...],
        preferred_element_type=jnp.float32,
    ).astype(jnp.bfloat16)


def _feature_transform(x, w_bf16, *, t):
    n, f_in = x.shape
    f_out = w_bf16.shape[1]
    return pl.pallas_call(
        _xw_kernel,
        out_shape=jax.ShapeDtypeStruct((n, f_out), jnp.bfloat16),
        grid=(n // t,),
        in_specs=[
            pl.BlockSpec((t, f_in), lambda i: (i, 0)),
            pl.BlockSpec((f_in, f_out), lambda i: (0, 0)),
        ],
        out_specs=pl.BlockSpec((t, f_out), lambda i: (i, 0)),
        compiler_params=pltpu.CompilerParams(
            dimension_semantics=("parallel",)),
    )(x, w_bf16)


# ---------------------------------------------------------------------------
# Kernel 2: tiled aggregation  out = act(A_norm @ XW + b)
#   grid = (rows/tm, cols/tk), f32 accumulator, reduction axis last.
# ---------------------------------------------------------------------------
def _agg_relu_dropout_kernel(a_ref, xw_ref, b_ref, mask_ref, o_ref, acc_ref):
    k = pl.program_id(1)

    @pl.when(k == 0)
    def _():
        acc_ref[...] = jnp.zeros_like(acc_ref)

    acc_ref[...] += jnp.dot(a_ref[...], xw_ref[...],
                            preferred_element_type=jnp.float32)

    @pl.when(k == pl.num_programs(1) - 1)
    def _():
        h = acc_ref[...] + b_ref[...]
        # relu, then dropout(p=0.5): mask holds {0.0, 2.0} (keep * 1/(1-p))
        h = jnp.maximum(h, 0.0) * mask_ref[...]
        o_ref[...] = h.astype(o_ref.dtype)


def _agg_leaky_kernel(a_ref, xw_ref, b_ref, o_ref, acc_ref):
    k = pl.program_id(1)

    @pl.when(k == 0)
    def _():
        acc_ref[...] = jnp.zeros_like(acc_ref)

    acc_ref[...] += jnp.dot(a_ref[...], xw_ref[...],
                            preferred_element_type=jnp.float32)

    @pl.when(k == pl.num_programs(1) - 1)
    def _():
        h = acc_ref[...] + b_ref[...]
        o_ref[...] = jnp.where(h >= 0.0, h, 0.01 * h).astype(o_ref.dtype)


def _gcn_aggregate(a_bf16, xw_bf16, bias, mask, *, tm, tk, out_dtype):
    n_rows, n_cols = a_bf16.shape
    f_out = xw_bf16.shape[1]

    if mask is not None:
        kernel = _agg_relu_dropout_kernel
        extra_inputs = (mask,)
        extra_specs = [pl.BlockSpec((tm, f_out), lambda i, k: (i, 0))]
    else:
        kernel = _agg_leaky_kernel
        extra_inputs = ()
        extra_specs = []

    flops = 2 * n_rows * n_cols * f_out
    bytes_accessed = (
        int(a_bf16.size) * 2
        + int(xw_bf16.size) * 2
        + n_rows * f_out * np.dtype(out_dtype).itemsize
    )

    return pl.pallas_call(
        kernel,
        out_shape=jax.ShapeDtypeStruct((n_rows, f_out), out_dtype),
        grid=(n_rows // tm, n_cols // tk),
        in_specs=[
            pl.BlockSpec((tm, tk), lambda i, k: (i, k)),       # A_norm tile
            pl.BlockSpec((tk, f_out), lambda i, k: (k, 0)),    # XW tile
            pl.BlockSpec((1, f_out), lambda i, k: (0, 0)),     # bias
        ] + extra_specs,
        out_specs=pl.BlockSpec((tm, f_out), lambda i, k: (i, 0)),
        scratch_shapes=[pltpu.VMEM((tm, f_out), jnp.float32)],
        compiler_params=pltpu.CompilerParams(
            dimension_semantics=("parallel", "arbitrary"),
            vmem_limit_bytes=48 * 1024 * 1024,
        ),
        cost_estimate=pl.CostEstimate(
            flops=flops, transcendentals=0, bytes_accessed=bytes_accessed),
    )(a_bf16, xw_bf16, bias, *extra_inputs)


# ---------------------------------------------------------------------------
# JAX glue: normalized adjacency + padding + two-layer forward
# ---------------------------------------------------------------------------
def build_normalized_adjacency(edge_index, num_nodes):
    """Dense D^{-1/2}(A+I)D^{-1/2} matching GCNConv(add_self_loops=True):
    duplicate edges sum into the degree; existing self-loops are replaced by
    weight-1 self loops (PyG's add_remaining_self_loops behavior)."""
    src, tgt = edge_index[0], edge_index[1]
    w = jnp.where(src != tgt, 1.0, 0.0).astype(jnp.float32)
    adj = jnp.zeros((num_nodes, num_nodes), jnp.float32)
    adj = adj.at[tgt, src].add(w)                        # message: src -> tgt
    adj = adj + jnp.eye(num_nodes, dtype=jnp.float32)    # fresh self loops
    deg = adj.sum(axis=1)
    dinv = jnp.where(deg > 0, 1.0 / jnp.sqrt(deg), 0.0)
    return dinv[:, None] * adj * dinv[None, :]


def simple_gcn_forward(x, edge_index, params, dropout_key, training=True):
    w1, b1, w2, b2 = params
    n, in_dim = x.shape
    z_dim = w2.shape[1]

    # tile size: full array for toy sizes, 256 for large graphs
    t = min(256, _round_up(max(n, 8), 8))
    n_pad = _round_up(n, t)

    a = build_normalized_adjacency(edge_index, n)
    a_bf = _pad2d(a, n_pad, n_pad).astype(jnp.bfloat16)
    x_pad = _pad2d(x.astype(jnp.float32), n_pad, in_dim)

    # zero-pad feature dims to 128 (lane-dense MXU / store path)
    w1p = _pad2d(w1, in_dim, F_PAD).astype(jnp.bfloat16)
    b1p = _pad2d(b1.reshape(1, -1).astype(jnp.float32), 1, F_PAD)
    w2p = _pad2d(w2, F_PAD, F_PAD).astype(jnp.bfloat16)
    b2p = _pad2d(b2.reshape(1, -1).astype(jnp.float32), 1, F_PAD)

    if training:
        keep = jax.random.bernoulli(dropout_key, 0.5, (n_pad, F_PAD))
        drop_mask = keep.astype(jnp.float32) * 2.0   # keep-prob 0.5, scale 2
    else:
        drop_mask = jnp.ones((n_pad, F_PAD), jnp.float32)

    # layer 1: h1 = dropout(relu(A @ (X W1) + b1))
    xw1 = _feature_transform(x_pad, w1p, t=t)
    h1 = _gcn_aggregate(a_bf, xw1, b1p, drop_mask, tm=t, tk=t,
                        out_dtype=jnp.bfloat16)

    # layer 2: out = leaky_relu(A @ (H1 W2) + b2, 0.01)
    xw2 = _feature_transform(h1, w2p, t=t)
    out_pad = _gcn_aggregate(a_bf, xw2, b2p, None, tm=t, tk=t,
                             out_dtype=jnp.float32)

    return out_pad[:n, :z_dim]


if __name__ == "__main__":
    N, E = 16, 40
    in_dim, h_dim, z_dim = 8, 32, 16

    key = jax.random.PRNGKey(0)
    k_x, k_src, k_tgt, k_w1, k_b1, k_w2, k_b2, k_drop = jax.random.split(key, 8)

    x = jax.random.normal(k_x, (N, in_dim), jnp.float32)
    src = jax.random.randint(k_src, (E,), 0, N, jnp.int32)
    tgt = jax.random.randint(k_tgt, (E,), 0, N, jnp.int32)
    edge_index = jnp.stack([src, tgt], axis=0)           # [2, E]

    w1 = jax.random.normal(k_w1, (in_dim, h_dim), jnp.float32) * 0.1
    b1 = jax.random.normal(k_b1, (h_dim,), jnp.float32) * 0.1
    w2 = jax.random.normal(k_w2, (h_dim, z_dim), jnp.float32) * 0.1
    b2 = jax.random.normal(k_b2, (z_dim,), jnp.float32) * 0.1

    out = simple_gcn_forward(x, edge_index, (w1, b1, w2, b2), k_drop,
                             training=True)
    out = jax.block_until_ready(out)
    assert out.shape == (N, z_dim) and out.dtype == jnp.float32
    assert bool(jnp.all(jnp.isfinite(out)))
    print("KERNEL_OK")
</pallas_src>

<mosaic_0001>
module attributes {stable_mosaic.version = 11 : i64} {
  func.func @_xw_kernel(%arg0: i32, %arg1: memref<16x8xf32, #tpu.memory_space<vmem>>, %arg2: memref<8x128xbf16, #tpu.memory_space<vmem>>, %arg3: memref<16x128xbf16, #tpu.memory_space<vmem>>) attributes {dimension_semantics = [#tpu.dimension_semantics<parallel>], iteration_bounds = array<i64: 1>, scalar_prefetch = 0 : i64, scratch_operands = 0 : i64, tpu.core_type = #tpu.core_type<tc>, window_params = [{transform_indices = @transform_0, window_bounds = array<i64: 16, 8>}, {pipeline_mode = #tpu.pipeline_mode<synchronous>, transform_indices = @transform_1, window_bounds = array<i64: 8, 128>}, {transform_indices = @transform_2, window_bounds = array<i64: 16, 128>}]} {
    %c0 = arith.constant 0 : index
    %c0_0 = arith.constant 0 : index
    %0 = vector.load %arg1[%c0, %c0_0] : memref<16x8xf32, #tpu.memory_space<vmem>>, vector<16x8xf32>
    %1 = arith.truncf %0 : vector<16x8xf32> to vector<16x8xbf16>
    %c0_1 = arith.constant 0 : index
    %c0_2 = arith.constant 0 : index
    %2 = vector.load %arg2[%c0_1, %c0_2] : memref<8x128xbf16, #tpu.memory_space<vmem>>, vector<8x128xbf16>
    %cst = arith.constant dense<0.000000e+00> : vector<16x128xf32>
    %3 = tpu.matmul %1, %2, %cst {dimension_numbers = #tpu.dot_dimension_numbers<[1], [0], [0], [1], [0, 0, 1, 1], [], []>} : vector<16x8xbf16>, vector<8x128xbf16>, vector<16x128xf32> -> vector<16x128xf32>
    %4 = arith.truncf %3 : vector<16x128xf32> to vector<16x128xbf16>
    %c0_3 = arith.constant 0 : index
    %c0_4 = arith.constant 0 : index
    %5 = vector.load %arg3[%c0_3, %c0_4] : memref<16x128xbf16, #tpu.memory_space<vmem>>, vector<16x128xbf16>
    tpu.vector_store %arg3[%c0_3, %c0_4], %4 {strides = array<i32>} : memref<16x128xbf16, #tpu.memory_space<vmem>>, vector<16x128xbf16>,
    return
  }
  func.func @transform_0(%arg0: i32) -> (i32, i32) {
    %c0_i32 = arith.constant 0 : i32
    %c0_i32_0 = arith.constant 0 : i32
    return %arg0, %c0_i32 : i32, i32
  }
  func.func @transform_1(%arg0: i32) -> (i32, i32) {
    %c0_i32 = arith.constant 0 : i32
    %c0_i32_0 = arith.constant 0 : i32
    %c0_i32_1 = arith.constant 0 : i32
    return %c0_i32, %c0_i32_0 : i32, i32
  }
  func.func @transform_2(%arg0: i32) -> (i32, i32) {
    %c0_i32 = arith.constant 0 : i32
    %c0_i32_0 = arith.constant 0 : i32
    return %arg0, %c0_i32 : i32, i32
  }
}

</mosaic_0001>

<llo_original>
// kernel: tpu_custom_call.1
$region0: #{tpu_custom_call.1}
  #allocation0 [shape = 'u32[]', space=smem, size = 0x4, offset = 0x4, fixed_abs, tag = 'smem constant byte address 0x4 - core index']
  #allocation1 [shape = 'u32[72,128]{1,0:T(1,128)}', space=vmem, size = 0x9000, scoped, tag = 'internal scratch']
  %s0 = inlined_call_operand.vmem [shape: f32[16,8], index: 0, kind: input, shape index: {}]
  %s1 = inlined_call_operand.vmem [shape: bf16[8,128], index: 1, kind: input, shape index: {}]
  %s2 = inlined_call_operand.hbm [shape: bf16[16,128], index: 2, kind: output, shape index: {}]
  %s3 = sld [smem:[#allocation0]]
  $region18: #{tpu_custom_call.1} parent=0
    _
  %s5 = ssub.s32 1, %s3
  %s6 = scalar_select 0, %s5, %s3
  $region1: #{tpu_custom_call.1} parent=0
    #allocation2 [shape = 'u8[4096]{0}', space=vmem, size = 0x1000, scoped, tag = 'output window, operand 0, single buffered']
    #allocation3 [shape = 's32[1]{0}', space=sflag, size = 0x4, scoped, tag = 'scoped memory for tpu_custom_call.1']
    %7 = vsyncpa [#allocation3], 0
    // Predicated region
    $region2: #{tpu_custom_call.1} parent=1 // pred_check
      _
    $region3: #{tpu_custom_call.1} parent=1 // pred_check_branch
      %9 = sbr.rel (0) target = $region5
    $region4: #{tpu_custom_call.1} parent=1 // pred_region
      _
    $region5: #{tpu_custom_call.1} parent=1 // pred_fallthru
      _
    // Predicated region
    $region6: #{tpu_custom_call.1} parent=1 // pred_check
      _
    $region7: #{tpu_custom_call.1} parent=1 // pred_check_branch
      %11 = sbr.rel (0) target = $region9
    $region8: #{tpu_custom_call.1} parent=1 // pred_region
      _
    $region9: #{tpu_custom_call.1} parent=1 // pred_fallthru
      _
    %v13 = vld [vmem:[%s0] sm:$0xff]
    %v14 = vld [vmem:[%s0 + $0x8] sm:$0xff]
    %v15 = vpack.c.bf16 %v14, %v13
    %v16 = vld [vmem:[%s1] sm:$0xf]
    %vm17 = vcmask 64512
    %v19 = vsel %vm17, %v15, 0
    %vm21 = vcmask 1043456
    %v23 = vsel %vm21, %v16, 0
    %25 = vmatpush.bf16.msra.mxu0 0
    %26 = vmatpush.bf16.msra.mxu0 0
    %27 = vmatpush.bf16.msra.mxu0 0
    %28 = vmatpush.bf16.msra.mxu0 0
    %29 = vmatpush.bf16.msra.mxu0 0
    %30 = vmatpush.bf16.msra.mxu0 0
    %31 = vmatpush.bf16.msra.mxu0 0
    %32 = vmatpush.bf16.msra.mxu0 %v23
    %33 = vmatmul.bf16.gmra.mxu0 %v19
    %v34 = vpop.f32.mrf.mxu0
    %v35 = vadd.f32 0.0, %v34
    %v36 = vpop.f32.mrf.mxu0
    %v37 = vadd.f32 0.0, %v36
    %38 = vdwg.mxu0
    %v39 = vpack.c.bf16 %v35, %v35
    %v40 = vpack.c.bf16 %v37, %v37
    %41 = vst [vmem:[#allocation2] sm:$0xf] %v39
    %42 = vst [vmem:[#allocation2 + $0x4] sm:$0xf] %v40
    // Predicated region
    $region10: #{tpu_custom_call.1} parent=1 // pred_check
      _
    $region11: #{tpu_custom_call.1} parent=1 // pred_check_branch
      %44 = sbr.rel (0) target = $region13
    $region12: #{tpu_custom_call.1} parent=1 // pred_region
      %46 = vsyncadd [#allocation3], 0
      %s47 = sshll.u32 [#allocation2], 4
      %s48 = int_to_ptr.vmem [resolvable:$true] %s47
      %s49 = sshll.u32 %s2, 4
      %s50 = int_to_ptr.hbm [resolvable:$true] %s49
      %55 = dma.vmem_to_hbm [thread:$0]  %s48, 128, %s50, [#allocation3], 64, 64, 4
    $region13: #{tpu_custom_call.1} parent=1 // pred_fallthru
      _
    // Predicated region
    $region14: #{tpu_custom_call.1} parent=1 // pred_check
      _
    $region15: #{tpu_custom_call.1} parent=1 // pred_check_branch
      %57 = sbr.rel (0) target = $region17
    $region16: #{tpu_custom_call.1} parent=1 // pred_region
      %59 = dma.done [#allocation3], 128
    $region17: #{tpu_custom_call.1} parent=1 // pred_fallthru
      _
    %60 = vsyncpa [#allocation3], 1

</llo_original>
